<compile_context>
chip_gen: v7x
topology: tpu7x:2x2x1
jax: 0.10.0
libtpu: 0.0.40
codegen_flags: <defaults>
</compile_context>

<pallas_src>
import math

import jax
import jax.numpy as jnp
from jax.experimental import pallas as pl
from jax.experimental.pallas import tpu as pltpu


def _round_up(v: int, mult: int) -> int:
    return ((v + mult - 1) // mult) * mult


def _padded_bytes(rows: int, cols: int, dtype_bytes: int) -> int:
    """Bytes a (rows, cols) VMEM block really occupies after (8,128) padding."""
    return _round_up(max(rows, 1), 8) * _round_up(max(cols, 1), 128) * dtype_bytes


def _vmem_capacity_bytes() -> int:
    """Physical VMEM of the current chip; conservative fallback if unknown."""
    try:
        return int(pltpu.get_tpu_info().vmem_capacity_bytes)
    except Exception:
        return 64 << 20  # v7x-sized (smallest) default keeps us safe everywhere


def _pick_pack(n: int, m: int, dtype_bytes: int, vmem_cap: int) -> int:
    """Rows folded per physical row so the output last dim becomes lane-dense."""
    if m >= 128:
        return 1
    pack = 128 // math.gcd(128, m)  # smallest pack with (m*pack) % 128 == 0
    if 2 * _padded_bytes(n * pack, m * pack, dtype_bytes) <= vmem_cap // 8:
        return pack
    # Weight would get too big: settle for >=128 output lanes (not a multiple).
    pack = max(1, -(-128 // m))
    if 2 * _padded_bytes(n * pack, m * pack, dtype_bytes) <= vmem_cap // 8:
        return pack
    return 1


def _pick_batch_tile(Bp: int, Kp: int, Np: int, dtype_bytes: int, vmem_cap: int) -> int:
    """Biggest packed-row tile that fits the (padded, double-buffered) VMEM budget.

    Also guarantees >= 2 grid steps when Bp >= 16 so v7x megacore can shard
    the parallel batch axis across both TensorCores.
    """
    # ~1/3 of physical VMEM for pipelined blocks: ~21 MiB on v7x, ~42 MiB on v5e/v6e.
    budget = min(vmem_cap // 3, 48 << 20)
    w_bytes = 2 * _padded_bytes(Kp, Np, dtype_bytes)  # resident weight, double-buffered
    per_row = 2 * dtype_bytes * (_round_up(Kp, 128) + _round_up(Np, 128))
    tm_cap = max(8, ((budget - w_bytes) // per_row) // 8 * 8)
    tm = min(tm_cap, _round_up(Bp, 8))
    if Bp >= 16:
        tm = min(tm, _round_up(pl.cdiv(Bp, 2), 8))
    return max(8, tm)


def _packed_linear_kernel(x_ref, w_ref, o_ref):
    # x_ref: (tm, Kp)  — tile of packed rows of x (lane-dense, Kp = pack*n)
    # w_ref: (Kp, Np)  — block-diagonal weight (pack copies of W.T), VMEM-resident
    # o_ref: (tm, Np)  — lane-dense output tile (Np = pack*m, multiple of 128)
    o_ref[...] = jnp.dot(
        x_ref[...], w_ref[...], preferred_element_type=jnp.float32
    ).astype(o_ref.dtype)


def cs_enc_forward(x, w, *, batch_tile=None):
    """y = x @ w.T  (nn.Linear(n, m, bias=False)).

    x: (B, n) float32
    w: (m, n) float32   (PyTorch Linear weight layout — NOT pre-transposed)
    returns (B, m) float32
    """
    B, n = x.shape
    m, n2 = w.shape
    assert n == n2, "feature dim mismatch"

    db = jnp.dtype(x.dtype).itemsize
    vmem_cap = _vmem_capacity_bytes()

    # --- lane-dense row packing -------------------------------------------
    pack = _pick_pack(n, m, db, vmem_cap)
    Kp, Np = n * pack, m * pack

    # One-time, tiny wrapper-side weight prep: block diagonal of `pack`
    # copies of W.T, so the kernel contracts ((1,),(0,)) with no per-step
    # transpose / relayout of the weight.
    if pack == 1:
        w_bd = w.T  # (n, m); only a few KB, so transposing in the wrapper is free
    else:
        w_bd = jnp.kron(jnp.eye(pack, dtype=w.dtype), w.T)  # (Kp, Np)

    # Packed-row count, rounded to the 8-sublane granularity (at most
    # 8*pack - 1 padded logical rows).
    Bp = _round_up(max(pl.cdiv(B, pack), 1), 8)
    B_needed = Bp * pack
    if B_needed != B:
        x = jnp.pad(x, ((0, B_needed - B), (0, 0)))
    x_packed = x.reshape(Bp, Kp)  # free row-major reshape

    # --- generation-aware tiling ------------------------------------------
    tm = batch_tile if batch_tile is not None else _pick_batch_tile(Bp, Kp, Np, db, vmem_cap)
    assert tm % 8 == 0 and tm >= 8, "batch tile must be a positive multiple of 8"
    grid = (pl.cdiv(Bp, tm),)

    # Padding-correct VMEM accounting (double-buffered x/out tiles + weight).
    vmem_needed = 2 * (
        _padded_bytes(tm, Kp, db)
        + _padded_bytes(tm, Np, db)
        + _padded_bytes(Kp, Np, db)
    )
    vmem_limit = int(
        min(max(4 << 20, vmem_needed * 3 // 2 + (1 << 20)), vmem_cap * 3 // 4)
    )

    cost = pl.CostEstimate(
        flops=2 * Bp * Kp * Np,
        bytes_accessed=db * (Bp * Kp + Kp * Np + Bp * Np),
        transcendentals=0,
    )

    y_packed = pl.pallas_call(
        _packed_linear_kernel,
        out_shape=jax.ShapeDtypeStruct((Bp, Np), x.dtype),
        grid=grid,
        in_specs=[
            # Packed x rows tiled over the grid; feature dim is one full block.
            pl.BlockSpec((tm, Kp), lambda i: (i, 0)),
            # Weight: constant block index -> stays resident in VMEM.
            pl.BlockSpec((Kp, Np), lambda i: (0, 0)),
        ],
        out_specs=pl.BlockSpec((tm, Np), lambda i: (i, 0)),
        compiler_params=pltpu.CompilerParams(
            dimension_semantics=("parallel",),  # pure batch axis, no reduction
            vmem_limit_bytes=vmem_limit,
        ),
        cost_estimate=cost,
    )(x_packed, w_bd)

    # Unpack: (Bp, pack*m) -> (Bp*pack, m), drop the padded rows.
    return y_packed.reshape(B_needed, m)[:B]


if __name__ == "__main__":
    # Shapes consistent with CS_enc(n, m): n=32 features -> m=16 codes.
    B, n, m = 512, 32, 16

    key = jax.random.PRNGKey(0)
    kx, kw, kx2 = jax.random.split(key, 3)

    # Deterministic synthetic parameter init, mimicking nn.Linear's
    # uniform(-1/sqrt(n), 1/sqrt(n)) default.
    bound = 1.0 / jnp.sqrt(jnp.float32(n))
    w = jax.random.uniform(kw, (m, n), jnp.float32, minval=-bound, maxval=bound)
    x = jax.random.normal(kx, (B, n), jnp.float32)

    y = jax.block_until_ready(cs_enc_forward(x, w))
    y_ref = x @ w.T
    assert y.shape == (B, m)
    assert jnp.allclose(y, y_ref, atol=1e-5, rtol=1e-5)

    # Ragged batch (not a multiple of 8*pack) exercises the zero-pad path.
    x2 = jax.random.normal(kx2, (100, n), jnp.float32)
    y2 = jax.block_until_ready(cs_enc_forward(x2, w))
    assert y2.shape == (100, m)
    assert jnp.allclose(y2, x2 @ w.T, atol=1e-5, rtol=1e-5)

    print("KERNEL_OK")
</pallas_src>

<mosaic_0001>
module attributes {stable_mosaic.version = 11 : i64} {
  func.func @_packed_linear_kernel(%arg0: i32, %arg1: memref<32x256xf32, #tpu.memory_space<vmem>>, %arg2: memref<256x128xf32, #tpu.memory_space<vmem>>, %arg3: memref<32x128xf32, #tpu.memory_space<vmem>>) attributes {dimension_semantics = [#tpu.dimension_semantics<parallel>], iteration_bounds = array<i64: 2>, scalar_prefetch = 0 : i64, scratch_operands = 0 : i64, tpu.core_type = #tpu.core_type<tc>, window_params = [{transform_indices = @transform_0, window_bounds = array<i64: 32, 256>}, {pipeline_mode = #tpu.pipeline_mode<synchronous>, transform_indices = @transform_1, window_bounds = array<i64: 256, 128>}, {transform_indices = @transform_2, window_bounds = array<i64: 32, 128>}]} {
    %c0 = arith.constant 0 : index
    %c0_0 = arith.constant 0 : index
    %0 = vector.load %arg1[%c0, %c0_0] : memref<32x256xf32, #tpu.memory_space<vmem>>, vector<32x256xf32>
    %c0_1 = arith.constant 0 : index
    %c0_2 = arith.constant 0 : index
    %1 = vector.load %arg2[%c0_1, %c0_2] : memref<256x128xf32, #tpu.memory_space<vmem>>, vector<256x128xf32>
    %cst = arith.constant dense<0.000000e+00> : vector<32x128xf32>
    %2 = tpu.matmul %0, %1, %cst {dimension_numbers = #tpu.dot_dimension_numbers<[1], [0], [0], [1], [0, 0, 1, 1], [], []>} : vector<32x256xf32>, vector<256x128xf32>, vector<32x128xf32> -> vector<32x128xf32>
    %c0_3 = arith.constant 0 : index
    %c0_4 = arith.constant 0 : index
    %3 = vector.load %arg3[%c0_3, %c0_4] : memref<32x128xf32, #tpu.memory_space<vmem>>, vector<32x128xf32>
    tpu.vector_store %arg3[%c0_3, %c0_4], %2 {strides = array<i32>} : memref<32x128xf32, #tpu.memory_space<vmem>>, vector<32x128xf32>,
    return
  }
  func.func @transform_0(%arg0: i32) -> (i32, i32) {
    %c0_i32 = arith.constant 0 : i32
    %c0_i32_0 = arith.constant 0 : i32
    return %arg0, %c0_i32 : i32, i32
  }
  func.func @transform_1(%arg0: i32) -> (i32, i32) {
    %c0_i32 = arith.constant 0 : i32
    %c0_i32_0 = arith.constant 0 : i32
    %c0_i32_1 = arith.constant 0 : i32
    return %c0_i32, %c0_i32_0 : i32, i32
  }
  func.func @transform_2(%arg0: i32) -> (i32, i32) {
    %c0_i32 = arith.constant 0 : i32
    %c0_i32_0 = arith.constant 0 : i32
    return %arg0, %c0_i32 : i32, i32
  }
}

</mosaic_0001>

<llo_original>
// kernel: tpu_custom_call.1
$region0: #{tpu_custom_call.1}
  #allocation0 [shape = 'u32[]', space=smem, size = 0x4, offset = 0x4, fixed_abs, tag = 'smem constant byte address 0x4 - core index']
  #allocation1 [shape = 'u32[144,128]{1,0:T(1,128)}', space=vmem, size = 0x12000, scoped, tag = 'internal scratch']
  %s0 = inlined_call_operand.hbm [shape: f32[64,256], index: 0, kind: input, shape index: {}]
  %s1 = inlined_call_operand.hbm [shape: f32[256,128], index: 1, kind: input, shape index: {}]
  %s2 = inlined_call_operand.hbm [shape: f32[64,128], index: 2, kind: output, shape index: {}]
  %s3 = sld [smem:[#allocation0]]
  $region49: #{tpu_custom_call.1} parent=0
    _
  %s5 = ssub.s32 1, %s3
  %s6 = scalar_select 0, %s5, %s3
  $region1: #{tpu_custom_call.1} parent=0
    #allocation2 [shape = 'u8[65536]{0}', space=vmem, size = 0x10000, scoped, tag = 'input window, operand 0']
    #allocation3 [shape = 's32[2]{0}', space=sflag, size = 0x8, scoped, tag = 'scoped memory for tpu_custom_call.1']
    #allocation4 [shape = 's32[2]{0}', space=sflag, size = 0x8, scoped, tag = 'scoped memory for tpu_custom_call.1']
    #allocation5 [shape = 'u8[131072]{0}', space=vmem, size = 0x20000, scoped, tag = 'input window, operand 1, single buffered']
    #allocation6 [shape = 's32[1]{0}', space=sflag, size = 0x4, scoped, tag = 'scoped memory for tpu_custom_call.1']
    #allocation7 [shape = 'u8[32768]{0}', space=vmem, size = 0x8000, scoped, tag = 'output window, operand 0']
    %7 = vsyncpa [#allocation3], 0
    %s8 = scalar_lea.sflag [#allocation3], 1
    %9 = vsyncpa %s8, 0
    %10 = vsyncpa [#allocation6], 0
    %11 = vsyncpa [#allocation4], 0
    %s12 = scalar_lea.sflag [#allocation4], 1
    %13 = vsyncpa %s12, 0
    loop: start=0, step=1, limit=4
    $region2: #{tpu_custom_call.1} parent=1 // loop_pre_header
      _
    $region3: #{tpu_custom_call.1} parent=1 // loop_header
      %s15 = sphi 0, %s19
      %p16 = scmp.ge.s32.totalorder %s15, 4
      %s25 = sphi 0, %s27
      %s28 = sphi 0, %s25
      %s29 = sphi 0, %s28
      %s45 = sphi 0, %s29
      %s49 = sphi 0, %s49
      %s51 = sphi 0, %s49
      %s52 = sphi 0, %s51
      %s66 = sphi 0, %s52
      %s72 = sphi 0, %s74
      %s75 = sphi 0, %s72
      %s76 = sphi 0, %s75
      %s92 = sphi 0, %s76
    $region4: #{tpu_custom_call.1} parent=1 // loop_header_branch
      %18 = sbr.rel (%p16) target = $region8
    $region5: #{tpu_custom_call.1} parent=1 // loop_body
      %s20 = ssub.s32 %s15, 1
      %s21 = ssub.s32 %s15, 2
      %s22 = sadd.s32 %s15, 1
      %s23 = ssub.s32 %s15, %s22
      %p24 = scmp.eq.s32.totalorder %s23, 0
      %s26 = sadd.s32 %s25, 1
      %s27 = scalar_select %p24, %s25, %s26
      %p30 = pneg %p24
      %p31 = scmp.eq.s32.totalorder %s15, 1
      %p32 = por %p30, %p31
      %p33 = scmp.ne.s32.totalorder %s25, %s28
      %p34 = scmp.eq.s32.totalorder %s15, 0
      %p35 = por %p33, %p34
      %p36 = scmp.ne.s32.totalorder %s25, %s28
      %p37 = scmp.eq.s32.totalorder %s20, 1
      %p38 = por %p36, %p37
      %p39 = scmp.ne.s32.totalorder %s28, %s29
      %p40 = scmp.eq.s32.totalorder %s20, 0
      %p41 = por %p39, %p40
      %p42 = scmp.ne.s32.totalorder %s28, %s29
      %p43 = scmp.eq.s32.totalorder %s21, 1
      %p44 = por %p42, %p43
      %p46 = scmp.ne.s32.totalorder %s29, %s45
      %p47 = scmp.eq.s32.totalorder %s21, 0
      %p48 = por %p46, %p47
      %s50 = sadd.s32 %s49, 1
      %p53 = scmp.eq.s32.totalorder %s15, 1
      %p54 = scmp.ne.s32.totalorder %s49, %s51
      %p55 = scmp.eq.s32.totalorder %s15, 0
      %p56 = por %p54, %p55
      %p57 = scmp.ne.s32.totalorder %s49, %s51
      %p58 = scmp.eq.s32.totalorder %s20, 1
      %p59 = por %p57, %p58
      %p60 = scmp.ne.s32.totalorder %s51, %s52
      %p61 = scmp.eq.s32.totalorder %s20, 0
      %p62 = por %p60, %p61
      %p63 = scmp.ne.s32.totalorder %s51, %s52
      %p64 = scmp.eq.s32.totalorder %s21, 1
      %p65 = por %p63, %p64
      %p67 = scmp.ne.s32.totalorder %s52, %s66
      %p68 = scmp.eq.s32.totalorder %s21, 0
      %p69 = por %p67, %p68
      %s70 = ssub.s32 %s15, %s22
      %p71 = scmp.eq.s32.totalorder %s70, 0
      %s73 = sadd.s32 %s72, 1
      %s74 = scalar_select %p71, %s72, %s73
      %p77 = pneg %p71
      %p78 = scmp.eq.s32.totalorder %s15, 1
      %p79 = por %p77, %p78
      %p80 = scmp.ne.s32.totalorder %s72, %s75
      %p81 = scmp.eq.s32.totalorder %s15, 0
      %p82 = por %p80, %p81
      %p83 = scmp.ne.s32.totalorder %s72, %s75
      %p84 = scmp.eq.s32.totalorder %s20, 1
      %p85 = por %p83, %p84
      %p86 = scmp.ne.s32.totalorder %s75, %s76
      %p87 = scmp.eq.s32.totalorder %s20, 0
      %p88 = por %p86, %p87
      %p89 = scmp.ne.s32.totalorder %s75, %s76
      %p90 = scmp.eq.s32.totalorder %s21, 1
      %p91 = por %p89, %p90
      %p93 = scmp.ne.s32.totalorder %s76, %s92
      %p94 = scmp.eq.s32.totalorder %s21, 0
      %p95 = por %p93, %p94
      %p96 = scmp.le.s32.totalorder 1, %s15
      %p97 = scmp.lt.s32.totalorder %s15, 3
      %p98 = pnand %p96, %p97
      %p99 = pneg %p98
      // Predicated region
      $region9: #{tpu_custom_call.1} parent=5 // pred_check
        _
      $region10: #{tpu_custom_call.1} parent=5 // pred_check_branch
        %101 = sbr.rel (%p98) target = $region12
      $region11: #{tpu_custom_call.1} parent=5 // pred_region
        %s102 = ssub.s32 %s15, 1
        // Predicated region
        $region13: #{tpu_custom_call.1} parent=11 // pred_check
          %p103 = pneg %p62
        $region14: #{tpu_custom_call.1} parent=11 // pred_check_branch
          %105 = sbr.rel (%p103) target = $region16
        $region15: #{tpu_custom_call.1} parent=11 // pred_region
          %s107 = ssub.s32 4096, 4096
          %108 = vsyncadd [#allocation6], %s107
          %s109 = sshll.u32 [#allocation5], 4
          %s110 = int_to_ptr.vmem [resolvable:$true] %s109
          %115 = dma.hbm_to_vmem [thread:$0]  %s1, 4096, %s110, [#allocation6], 128, 128, 8
        $region16: #{tpu_custom_call.1} parent=11 // pred_fallthru
          _
      $region12: #{tpu_custom_call.1} parent=5 // pred_fallthru
        _
      %p116 = scmp.lt.s32.totalorder %s15, 2
      // Predicated region
      $region17: #{tpu_custom_call.1} parent=5 // pred_check
        %p117 = pneg %p116
      $region18: #{tpu_custom_call.1} parent=5 // pred_check_branch
        %119 = sbr.rel (%p117) target = $region20
      $region19: #{tpu_custom_call.1} parent=5 // pred_region
        // Predicated region
        $region21: #{tpu_custom_call.1} parent=19 // pred_check
          %p120 = pneg %p35
        $region22: #{tpu_custom_call.1} parent=19 // pred_check_branch
          %122 = sbr.rel (%p120) target = $region24
        $region23: #{tpu_custom_call.1} parent=19 // pred_region
          %s123 = sand.u32 %s25, 1
          %s124 = scalar_lea.sflag [#allocation3], %s123
          %s125 = sand.u32 %s25, 1
          %s126 = smul.addr %s125, 64
          %s127 = scalar_lea.vmem [#allocation2], %s126
          %s128 = smul.u32 4, %s15
          %s130 = ssub.s32 1024, 1024
          %131 = vsyncadd %s124, %s130
          %s132 = smul.addr %s128, 2
          %s133 = smul.addr %s132, 128
          %s134 = scalar_lea.hbm %s0, %s133
          %s135 = sshll.u32 %s127, 4
          %s136 = int_to_ptr.vmem [resolvable:$true] %s135
          %141 = dma.hbm_to_vmem [thread:$0]  %s134, 1024, %s136, %s124, 256, 256, 16
        $region24: #{tpu_custom_call.1} parent=19 // pred_fallthru
          _
      $region20: #{tpu_custom_call.1} parent=5 // pred_fallthru
        _
      %p142 = scmp.le.s32.totalorder 1, %s15
      %p143 = scmp.lt.s32.totalorder %s15, 3
      %p144 = pnand %p142, %p143
      %p145 = pneg %p144
      // Predicated region
      $region25: #{tpu_custom_call.1} parent=5 // pred_check
        _
      $region26: #{tpu_custom_call.1} parent=5 // pred_check_branch
        %147 = sbr.rel (%p144) target = $region28
      $region27: #{tpu_custom_call.1} parent=5 // pred_region
        %s148 = ssub.s32 %s15, 1
        %s149 = sand.u32 %s28, 1
        %s150 = scalar_lea.sflag [#allocation3], %s149
        %s151 = sand.u32 %s28, 1
        %s152 = smul.addr %s151, 64
        %s153 = scalar_lea.vmem [#allocation2], %s152
        // Predicated region
        $region29: #{tpu_custom_call.1} parent=27 // pred_check
          %p154 = pneg %p41
        $region30: #{tpu_custom_call.1} parent=27 // pred_check_branch
          %156 = sbr.rel (%p154) target = $region32
        $region31: #{tpu_custom_call.1} parent=27 // pred_region
          %157 = dma.done %s150, 1024
        $region32: #{tpu_custom_call.1} parent=27 // pred_fallthru
          _
        // Predicated region
        $region33: #{tpu_custom_call.1} parent=27 // pred_check
          %p158 = pneg %p62
        $region34: #{tpu_custom_call.1} parent=27 // pred_check_branch
          %160 = sbr.rel (%p158) target = $region36
        $region35: #{tpu_custom_call.1} parent=27 // pred_region
          %161 = dma.done [#allocation6], 4096
        $region36: #{tpu_custom_call.1} parent=27 // pred_fallthru
          _
        %s162 = sand.u32 %s28, 1
        %s163 = scalar_lea.sflag [#allocation3], %s162
        %s164 = sand.u32 %s28, 1
        %s165 = smul.addr %s164, 64
        %s166 = scalar_lea.vmem [#allocation2], %s165
        %p167 = pneg %p41
        %p168 = pneg %p38
        %p169 = pneg %p62
        %p170 = pneg %p59
        %p171 = pneg %p88
        %p172 = pneg %p85
        %s173 = sand.u32 %s75, 1
        %s174 = scalar_lea.sflag [#allocation4], %s173
        %s175 = sand.u32 %s75, 1
        %s176 = smul.addr %s175, 32
        %s177 = scalar_lea.vmem [#allocation7], %s176
        %s178 = smul.u32 4, %s20
        %s179 = smul.u32 4, %s20
        %v180 = vld [vmem:[%s153] sm:$0xff]
        %v181 = vld [vmem:[%s153 + $0x8] sm:$0xff]
        %v182 = vld [vmem:[%s153 + $0x10] sm:$0xff]
        %v183 = vld [vmem:[%s153 + $0x18] sm:$0xff]
        %v184 = vld [vmem:[%s153 + $0x20] sm:$0xff]
        %v185 = vld [vmem:[%s153 + $0x28] sm:$0xff]
        %v186 = vld [vmem:[%s153 + $0x30] sm:$0xff]
        %v187 = vld [vmem:[%s153 + $0x38] sm:$0xff]
        %v188 = vld [vmem:[#allocation5] sm:$0xff]
        %v189 = vld [vmem:[#allocation5 + $0x8] sm:$0xff]
        %v190 = vld [vmem:[#allocation5 + $0x10] sm:$0xff]
        %v191 = vld [vmem:[#allocation5 + $0x18] sm:$0xff]
        %v192 = vld [vmem:[#allocation5 + $0x20] sm:$0xff]
        %v193 = vld [vmem:[#allocation5 + $0x28] sm:$0xff]
        %v194 = vld [vmem:[#allocation5 + $0x30] sm:$0xff]
        %v195 = vld [vmem:[#allocation5 + $0x38] sm:$0xff]
        %v196 = vld [vmem:[#allocation5 + $0x40] sm:$0xff]
        %v197 = vld [vmem:[#allocation5 + $0x48] sm:$0xff]
        %v198 = vld [vmem:[#allocation5 + $0x50] sm:$0xff]
        %v199 = vld [vmem:[#allocation5 + $0x58] sm:$0xff]
        %v200 = vld [vmem:[#allocation5 + $0x60] sm:$0xff]
        %v201 = vld [vmem:[#allocation5 + $0x68] sm:$0xff]
        %v202 = vld [vmem:[#allocation5 + $0x70] sm:$0xff]
        %v203 = vld [vmem:[#allocation5 + $0x78] sm:$0xff]
        %v204 = vld [vmem:[#allocation5 + $0x80] sm:$0xff]
        %v205 = vld [vmem:[#allocation5 + $0x88] sm:$0xff]
        %v206 = vld [vmem:[#allocation5 + $0x90] sm:$0xff]
        %v207 = vld [vmem:[#allocation5 + $0x98] sm:$0xff]
        %v208 = vld [vmem:[#allocation5 + $0xa0] sm:$0xff]
        %v209 = vld [vmem:[#allocation5 + $0xa8] sm:$0xff]
        %v210 = vld [vmem:[#allocation5 + $0xb0] sm:$0xff]
        %v211 = vld [vmem:[#allocation5 + $0xb8] sm:$0xff]
        %v212 = vld [vmem:[#allocation5 + $0xc0] sm:$0xff]
        %v213 = vld [vmem:[#allocation5 + $0xc8] sm:$0xff]
        %v214 = vld [vmem:[#allocation5 + $0xd0] sm:$0xff]
        %v215 = vld [vmem:[#allocation5 + $0xd8] sm:$0xff]
        %v216 = vld [vmem:[#allocation5 + $0xe0] sm:$0xff]
        %v217 = vld [vmem:[#allocation5 + $0xe8] sm:$0xff]
        %v218 = vld [vmem:[#allocation5 + $0xf0] sm:$0xff]
        %v219 = vld [vmem:[#allocation5 + $0xf8] sm:$0xff]
        %220 = vmatprep.subr.mxu0 0.0
        %221 = vmatpush1.msra.mxu0 %v188
        %222 = vmatprep.subr.mxu0 0.0
        %223 = vmatpush1.msra.mxu0 %v189
        %224 = vmatprep.subr.mxu0 0.0
        %225 = vmatpush1.msra.mxu0 %v190
        %226 = vmatprep.subr.mxu0 0.0
        %227 = vmatpush1.msra.mxu0 %v191
        %228 = vmatprep.subr.mxu0 0.0
        %229 = vmatpush1.msra.mxu0 %v192
        %230 = vmatprep.subr.mxu0 0.0
        %231 = vmatpush1.msra.mxu0 %v193
        %232 = vmatprep.subr.mxu0 0.0
        %233 = vmatpush1.msra.mxu0 %v194
        %234 = vmatprep.subr.mxu0 0.0
        %235 = vmatpush1.msra.mxu0 %v195
        %236 = vmatprep.subr.mxu0 0.0
        %237 = vmatpush1.msra.mxu0 %v196
        %238 = vmatprep.subr.mxu0 0.0
        %239 = vmatpush1.msra.mxu0 %v197
        %240 = vmatprep.subr.mxu0 0.0
        %241 = vmatpush1.msra.mxu0 %v198
        %242 = vmatprep.subr.mxu0 0.0
        %243 = vmatpush1.msra.mxu0 %v199
        %244 = vmatprep.subr.mxu0 0.0
        %245 = vmatpush1.msra.mxu0 %v200
        %246 = vmatprep.subr.mxu0 0.0
        %247 = vmatpush1.msra.mxu0 %v201
        %248 = vmatprep.subr.mxu0 0.0
        %249 = vmatpush1.msra.mxu0 %v202
        %250 = vmatprep.subr.mxu0 0.0
        %251 = vmatpush1.msra.mxu0 %v203
        %252 = vmatprep.subr.mxu0 0.0
        %253 = vmatpush1.msra.mxu0 %v204
        %254 = vmatprep.subr.mxu0 0.0
        %255 = vmatpush1.msra.mxu0 %v205
        %256 = vmatprep.subr.mxu0 0.0
        %257 = vmatpush1.msra.mxu0 %v206
        %258 = vmatprep.subr.mxu0 0.0
        %259 = vmatpush1.msra.mxu0 %v207
        %260 = vmatprep.subr.mxu0 0.0
        %261 = vmatpush1.msra.mxu0 %v208
        %262 = vmatprep.subr.mxu0 0.0
        %263 = vmatpush1.msra.mxu0 %v209
        %264 = vmatprep.subr.mxu0 0.0
        %265 = vmatpush1.msra.mxu0 %v210
        %266 = vmatprep.subr.mxu0 0.0
        %267 = vmatpush1.msra.mxu0 %v211
        %268 = vmatprep.subr.mxu0 0.0
        %269 = vmatpush1.msra.mxu0 %v212
        %270 = vmatprep.subr.mxu0 0.0
        %271 = vmatpush1.msra.mxu0 %v213
        %272 = vmatprep.subr.mxu0 0.0
        %273 = vmatpush1.msra.mxu0 %v214
        %274 = vmatprep.subr.mxu0 0.0
        %275 = vmatpush1.msra.mxu0 %v215
        %276 = vmatprep.subr.mxu0 0.0
        %277 = vmatpush1.msra.mxu0 %v216
        %278 = vmatprep.subr.mxu0 0.0
        %279 = vmatpush1.msra.mxu0 %v217
        %280 = vmatprep.subr.mxu0 0.0
        %281 = vmatpush1.msra.mxu0 %v218
        %282 = vmatprep.subr.mxu0 0.0
        %283 = vmatpush1.msra.mxu0 %v219
        %284 = vmatprep.mubr.f32.mxu0 %v181
        %285 = vmatmul.mubr.f32.gmra.mrb[0].mxu0 %v180
        %v286 = vpop.f32.mrb[0].mxu0
        %v287 = vadd.f32 0.0, %v286
        %v288 = vpop.f32.mrb[0].mxu0
        %289 = vmatprep.mubr.f32.mxu0 %v183
        %290 = vmatmul.mubr.f32.gmra.mrb[0].mxu0 %v182
        %v291 = vpop.f32.mrb[0].mxu0
        %v292 = vadd.f32 0.0, %v291
        %v293 = vpop.f32.mrb[0].mxu0
        %294 = vmatprep.mubr.f32.mxu0 %v185
        %295 = vmatmul.mubr.f32.gmra.mrb[0].mxu0 %v184
        %v296 = vpop.f32.mrb[0].mxu0
        %v297 = vadd.f32 0.0, %v296
        %v298 = vpop.f32.mrb[0].mxu0
        %299 = vmatprep.mubr.f32.mxu0 %v187
        %300 = vmatmul.mubr.f32.gmra.mrb[0].mxu0 %v186
        %v301 = vpop.f32.mrb[0].mxu0
        %v302 = vadd.f32 0.0, %v301
        %v303 = vpop.f32.mrb[0].mxu0
        %304 = vdwg.mxu0
        %305 = vst [vmem:[%s177] sm:$0xff] %v287
        %306 = vst [vmem:[%s177 + $0x8] sm:$0xff] %v292
        %307 = vst [vmem:[%s177 + $0x10] sm:$0xff] %v297
        %308 = vst [vmem:[%s177 + $0x18] sm:$0xff] %v302
        %s309 = sand.u32 %s75, 1
        %s310 = scalar_lea.sflag [#allocation4], %s309
        %s311 = sand.u32 %s75, 1
        %s312 = smul.addr %s311, 32
        %s313 = scalar_lea.vmem [#allocation7], %s312
        // Predicated region
        $region37: #{tpu_custom_call.1} parent=27 // pred_check
          %p314 = pneg %p85
        $region38: #{tpu_custom_call.1} parent=27 // pred_check_branch
          %316 = sbr.rel (%p314) target = $region40
        $region39: #{tpu_custom_call.1} parent=27 // pred_region
          %s317 = smul.u32 4, %s20
          %s319 = ssub.s32 512, 512
          %320 = vsyncadd %s310, %s319
          %s321 = smul.addr %s317, 128
          %s322 = scalar_lea.hbm %s2, %s321
          %s323 = sshll.u32 %s313, 4
          %s324 = int_to_ptr.vmem [resolvable:$true] %s323
          %329 = dma.vmem_to_hbm [thread:$0]  %s324, 512, %s322, %s310, 128, 128, 8
        $region40: #{tpu_custom_call.1} parent=27 // pred_fallthru
          _
      $region28: #{tpu_custom_call.1} parent=5 // pred_fallthru
        _
      %p330 = scmp.le.s32.totalorder 2, %s15
      // Predicated region
      $region41: #{tpu_custom_call.1} parent=5 // pred_check
        %p331 = pneg %p330
      $region42: #{tpu_custom_call.1} parent=5 // pred_check_branch
        %333 = sbr.rel (%p331) target = $region44
      $region43: #{tpu_custom_call.1} parent=5 // pred_region
        %s334 = ssub.s32 %s15, 2
        // Predicated region
        $region45: #{tpu_custom_call.1} parent=43 // pred_check
          %p335 = pneg %p91
        $region46: #{tpu_custom_call.1} parent=43 // pred_check_branch
          %337 = sbr.rel (%p335) target = $region48
        $region47: #{tpu_custom_call.1} parent=43 // pred_region
          %s338 = sand.u32 %s76, 1
          %s339 = scalar_lea.sflag [#allocation4], %s338
          %s340 = sand.u32 %s76, 1
          %s341 = smul.addr %s340, 32
          %s342 = scalar_lea.vmem [#allocation7], %s341
          %343 = dma.done %s339, 512
        $region48: #{tpu_custom_call.1} parent=43 // pred_fallthru
          _
      $region44: #{tpu_custom_call.1} parent=5 // pred_fallthru
        _
    $region6: #{tpu_custom_call.1} parent=1 // loop_footer
      %s19 = sadd.s32 1, %s15
    $region7: #{tpu_custom_call.1} parent=1 // loop_footer_branch
      %14 = sbr.rel target = $region3
    $region8: #{tpu_custom_call.1} parent=1 // loop_exit
      _
    %344 = vsyncpa [#allocation3], 1
    %s345 = scalar_lea.sflag [#allocation3], 1
    %346 = vsyncpa %s345, 1
    %347 = vsyncpa [#allocation6], 1
    %348 = vsyncpa [#allocation4], 1
    %s349 = scalar_lea.sflag [#allocation4], 1
    %350 = vsyncpa %s349, 1

</llo_original>
